<compile_context>
chip_gen: v7x
topology: tpu7x:2x2x1
jax: 0.10.0
libtpu: 0.0.40
codegen_flags: <defaults>
</compile_context>

<pallas_src>
import jax
import jax.numpy as jnp
from jax.experimental import pallas as pl
from jax.experimental.pallas import tpu as pltpu


@jax.jit
def coord_conv(x_nchw, w_oihw, bias):
    """CoordConv forward: x (B,C,H,W) -> (B,O,H,W). kernel_size=3, pad=1."""
    B, C, H, W = x_nchw.shape
    O, CIN, KH, KW = w_oihw.shape
    assert CIN == C + 2 and KH == 3 and KW == 3
    assert H > 1 and W > 1, "xx/yy normalization needs H,W >= 2"

    HW = H * W
    PAD = W + 1                 # lane extension so every tap slice stays in-bounds
    EXT = HW + 2 * PAD

    # ---- input: NCHW flat, zero-extended along the (row-major) spatial axis ----
    xf = x_nchw.astype(jnp.float32).reshape(B, C, HW)        # free reshape
    x_ext = jnp.pad(xf, ((0, 0), (0, 0), (PAD, PAD)))        # tiny contiguous pad

    # ---- per-tap data-channel weights: (O,C,3,3) -> (9, O, C), tap t = 3*kh+kw ----
    w32 = w_oihw.astype(jnp.float32)
    w_taps = jnp.transpose(w32[:, :C], (2, 3, 0, 1)).reshape(9, O, C)

    # ---- column-boundary masks (handle the w==0 / w==W-1 wrap of flat shifts) ----
    w_idx = jnp.arange(HW, dtype=jnp.int32) % W
    masks = jnp.stack([(w_idx != 0).astype(jnp.float32),       # for kw==0 taps
                       (w_idx != W - 1).astype(jnp.float32)],  # for kw==2 taps
                      axis=0)                                   # (2, HW)

    # ---- constant coordinate-channel contribution + bias, computed once ----
    # xx varies along H, yy varies along W (matches get_grid / torch.cat order).
    hh = (jnp.arange(H, dtype=jnp.float32) / (H - 1)) * 2.0 - 1.0
    ww = (jnp.arange(W, dtype=jnp.float32) / (W - 1)) * 2.0 - 1.0
    coords = jnp.stack([jnp.broadcast_to(hh[:, None], (H, W)),
                        jnp.broadcast_to(ww[None, :], (H, W))], axis=0)   # (2,H,W)
    coords_pad = jnp.pad(coords, ((0, 0), (1, 1), (1, 1)))                # (2,H+2,W+2)
    term = jnp.broadcast_to(bias.astype(jnp.float32)[:, None, None], (O, H, W))
    for kh in range(3):
        for kw in range(3):
            xx_win = coords_pad[0, kh:kh + H, kw:kw + W]
            yy_win = coords_pad[1, kh:kh + H, kw:kw + W]
            term = (term
                    + w32[:, C, kh, kw][:, None, None] * xx_win[None]
                    + w32[:, C + 1, kh, kw][:, None, None] * yy_win[None])
    coord_bias = term.reshape(O, HW)                                      # (O, HW)

    # ---- the Pallas kernel: 9 shifted taps, spatial axis on lanes ----
    def kernel(x_ref, w_ref, mask_ref, cb_ref, o_ref):
        # x_ref   : (C, EXT)   zero-extended flat input for one batch element
        # w_ref   : (9, O, C)  per-tap weights
        # mask_ref: (2, HW)    [not_left_col, not_right_col]
        # cb_ref  : (O, HW)    precomputed coord-channel contribution + bias
        # o_ref   : (O, HW)
        acc = cb_ref[...]                                  # seed with constant term
        for kw in range(3):
            part = None
            for kh in range(3):
                s = PAD + (kh - 1) * W + (kw - 1)          # static lane offset
                x_tap = x_ref[:, s:s + HW]                 # (C, HW) view/load
                c = jnp.dot(w_ref[3 * kh + kw], x_tap,
                            preferred_element_type=jnp.float32)
                part = c if part is None else part + c
            if kw == 0:
                part = part * mask_ref[0:1, :]
            elif kw == 2:
                part = part * mask_ref[1:2, :]
            acc = acc + part
        o_ref[...] = acc

    out_flat = pl.pallas_call(
        kernel,
        out_shape=jax.ShapeDtypeStruct((B, O, HW), jnp.float32),
        grid=(B,),
        in_specs=[
            pl.BlockSpec((None, C, EXT), lambda b: (b, 0, 0)),
            pl.BlockSpec((9, O, C), lambda b: (0, 0, 0)),
            pl.BlockSpec((2, HW), lambda b: (0, 0)),
            pl.BlockSpec((O, HW), lambda b: (0, 0)),
        ],
        out_specs=pl.BlockSpec((None, O, HW), lambda b: (b, 0, 0)),
        compiler_params=pltpu.CompilerParams(dimension_semantics=("parallel",)),
    )(x_ext, w_taps, masks, coord_bias)

    return out_flat.reshape(B, O, H, W)                    # free reshape (NCHW-flat)


def coord_conv_reference(x, w_oihw, bias):
    """Plain-JAX reference reproducing the PyTorch module semantics (NCHW)."""
    B, C, H, W = x.shape
    hs = (jnp.arange(H, dtype=jnp.float32) / (H - 1)) * 2.0 - 1.0
    ws = (jnp.arange(W, dtype=jnp.float32) / (W - 1)) * 2.0 - 1.0
    xx = jnp.broadcast_to(hs[:, None], (H, W))[None, None]   # varies along H
    yy = jnp.broadcast_to(ws[None, :], (H, W))[None, None]   # varies along W
    ret = jnp.concatenate(
        [x,
         jnp.broadcast_to(xx, (B, 1, H, W)),
         jnp.broadcast_to(yy, (B, 1, H, W))], axis=1)
    out = jax.lax.conv_general_dilated(
        ret, w_oihw, window_strides=(1, 1), padding=((1, 1), (1, 1)),
        dimension_numbers=("NCHW", "OIHW", "NCHW"),
        precision=jax.lax.Precision.HIGHEST)
    return out + bias[None, :, None, None]


if __name__ == "__main__":
    B, C, H, W = 2, 4, 16, 16   # H/W=16 -> AddCoords uses grid16
    O = 8                       # out_channels

    key = jax.random.PRNGKey(0)
    kx, kwt, kb = jax.random.split(key, 3)
    x = jax.random.normal(kx, (B, C, H, W), dtype=jnp.float32)
    # nn.Conv2d(C+2, O, kernel_size=3, padding=1): weight (O, C+2, 3, 3), bias (O,)
    w = jax.random.normal(kwt, (O, C + 2, 3, 3), dtype=jnp.float32) * 0.1
    b = jax.random.normal(kb, (O,), dtype=jnp.float32) * 0.1

    out = coord_conv(x, w, b)
    out = jax.block_until_ready(out)

    ref = coord_conv_reference(x, w, b)
    max_err = float(jnp.max(jnp.abs(out - ref)))
    assert out.shape == (B, O, H, W)
    assert max_err < 1e-4, f"mismatch vs reference: {max_err}"
    print("KERNEL_OK")
</pallas_src>

<mosaic_0001>
module attributes {stable_mosaic.version = 11 : i64} {
  func.func @kernel(%arg0: i32, %arg1: memref<1x4x290xf32, #tpu.memory_space<vmem>>, %arg2: memref<9x8x4xf32, #tpu.memory_space<vmem>>, %arg3: memref<2x256xf32, #tpu.memory_space<vmem>>, %arg4: memref<8x256xf32, #tpu.memory_space<vmem>>, %arg5: memref<1x8x256xf32, #tpu.memory_space<vmem>>) attributes {dimension_semantics = [#tpu.dimension_semantics<parallel>], iteration_bounds = array<i64: 2>, scalar_prefetch = 0 : i64, scratch_operands = 0 : i64, tpu.core_type = #tpu.core_type<tc>, window_params = [{transform_indices = @transform_0, window_bounds = array<i64: 1, 4, 290>}, {pipeline_mode = #tpu.pipeline_mode<synchronous>, transform_indices = @transform_1, window_bounds = array<i64: 9, 8, 4>}, {pipeline_mode = #tpu.pipeline_mode<synchronous>, transform_indices = @transform_2, window_bounds = array<i64: 2, 256>}, {pipeline_mode = #tpu.pipeline_mode<synchronous>, transform_indices = @transform_3, window_bounds = array<i64: 8, 256>}, {transform_indices = @transform_4, window_bounds = array<i64: 1, 8, 256>}]} {
    %c0 = arith.constant 0 : index
    %c0_0 = arith.constant 0 : index
    %0 = vector.load %arg4[%c0, %c0_0] : memref<8x256xf32, #tpu.memory_space<vmem>>, vector<8x256xf32>
    %c0_1 = arith.constant 0 : index
    %c0_2 = arith.constant 0 : index
    %c0_3 = arith.constant 0 : index
    %1 = vector.load %arg1[%c0_1, %c0_2, %c0_3] : memref<1x4x290xf32, #tpu.memory_space<vmem>>, vector<1x4x256xf32>
    %2 = vector.shape_cast %1 : vector<1x4x256xf32> to vector<4x256xf32>
    %c0_4 = arith.constant 0 : index
    %c0_5 = arith.constant 0 : index
    %c0_6 = arith.constant 0 : index
    %3 = vector.load %arg2[%c0_4, %c0_5, %c0_6] : memref<9x8x4xf32, #tpu.memory_space<vmem>>, vector<1x8x4xf32>
    %4 = vector.shape_cast %3 : vector<1x8x4xf32> to vector<8x4xf32>
    %cst = arith.constant dense<0.000000e+00> : vector<8x256xf32>
    %5 = tpu.matmul %4, %2, %cst {dimension_numbers = #tpu.dot_dimension_numbers<[1], [0], [0], [1], [0, 0, 1, 1], [], []>} : vector<8x4xf32>, vector<4x256xf32>, vector<8x256xf32> -> vector<8x256xf32>
    %c0_7 = arith.constant 0 : index
    %c0_8 = arith.constant 0 : index
    %c16 = arith.constant 16 : index
    %6 = vector.load %arg1[%c0_7, %c0_8, %c16] : memref<1x4x290xf32, #tpu.memory_space<vmem>>, vector<1x4x256xf32>
    %7 = vector.shape_cast %6 : vector<1x4x256xf32> to vector<4x256xf32>
    %c3 = arith.constant 3 : index
    %c0_9 = arith.constant 0 : index
    %c0_10 = arith.constant 0 : index
    %8 = vector.load %arg2[%c3, %c0_9, %c0_10] : memref<9x8x4xf32, #tpu.memory_space<vmem>>, vector<1x8x4xf32>
    %9 = vector.shape_cast %8 : vector<1x8x4xf32> to vector<8x4xf32>
    %cst_11 = arith.constant dense<0.000000e+00> : vector<8x256xf32>
    %10 = tpu.matmul %9, %7, %cst_11 {dimension_numbers = #tpu.dot_dimension_numbers<[1], [0], [0], [1], [0, 0, 1, 1], [], []>} : vector<8x4xf32>, vector<4x256xf32>, vector<8x256xf32> -> vector<8x256xf32>
    %11 = arith.addf %5, %10 : vector<8x256xf32>
    %c0_12 = arith.constant 0 : index
    %c0_13 = arith.constant 0 : index
    %c32 = arith.constant 32 : index
    %12 = vector.load %arg1[%c0_12, %c0_13, %c32] : memref<1x4x290xf32, #tpu.memory_space<vmem>>, vector<1x4x256xf32>
    %13 = vector.shape_cast %12 : vector<1x4x256xf32> to vector<4x256xf32>
    %c6 = arith.constant 6 : index
    %c0_14 = arith.constant 0 : index
    %c0_15 = arith.constant 0 : index
    %14 = vector.load %arg2[%c6, %c0_14, %c0_15] : memref<9x8x4xf32, #tpu.memory_space<vmem>>, vector<1x8x4xf32>
    %15 = vector.shape_cast %14 : vector<1x8x4xf32> to vector<8x4xf32>
    %cst_16 = arith.constant dense<0.000000e+00> : vector<8x256xf32>
    %16 = tpu.matmul %15, %13, %cst_16 {dimension_numbers = #tpu.dot_dimension_numbers<[1], [0], [0], [1], [0, 0, 1, 1], [], []>} : vector<8x4xf32>, vector<4x256xf32>, vector<8x256xf32> -> vector<8x256xf32>
    %17 = arith.addf %11, %16 : vector<8x256xf32>
    %c0_17 = arith.constant 0 : index
    %c0_18 = arith.constant 0 : index
    %18 = vector.load %arg3[%c0_17, %c0_18] : memref<2x256xf32, #tpu.memory_space<vmem>>, vector<1x256xf32>
    %19 = vector.broadcast %18 : vector<1x256xf32> to vector<8x256xf32>
    %20 = arith.mulf %17, %19 : vector<8x256xf32>
    %21 = arith.addf %0, %20 : vector<8x256xf32>
    %c0_19 = arith.constant 0 : index
    %c0_20 = arith.constant 0 : index
    %c1 = arith.constant 1 : index
    %22 = vector.load %arg1[%c0_19, %c0_20, %c1] : memref<1x4x290xf32, #tpu.memory_space<vmem>>, vector<1x4x256xf32>
    %23 = vector.shape_cast %22 : vector<1x4x256xf32> to vector<4x256xf32>
    %c1_21 = arith.constant 1 : index
    %c0_22 = arith.constant 0 : index
    %c0_23 = arith.constant 0 : index
    %24 = vector.load %arg2[%c1_21, %c0_22, %c0_23] : memref<9x8x4xf32, #tpu.memory_space<vmem>>, vector<1x8x4xf32>
    %25 = vector.shape_cast %24 : vector<1x8x4xf32> to vector<8x4xf32>
    %cst_24 = arith.constant dense<0.000000e+00> : vector<8x256xf32>
    %26 = tpu.matmul %25, %23, %cst_24 {dimension_numbers = #tpu.dot_dimension_numbers<[1], [0], [0], [1], [0, 0, 1, 1], [], []>} : vector<8x4xf32>, vector<4x256xf32>, vector<8x256xf32> -> vector<8x256xf32>
    %c0_25 = arith.constant 0 : index
    %c0_26 = arith.constant 0 : index
    %c17 = arith.constant 17 : index
    %27 = vector.load %arg1[%c0_25, %c0_26, %c17] : memref<1x4x290xf32, #tpu.memory_space<vmem>>, vector<1x4x256xf32>
    %28 = vector.shape_cast %27 : vector<1x4x256xf32> to vector<4x256xf32>
    %c4 = arith.constant 4 : index
    %c0_27 = arith.constant 0 : index
    %c0_28 = arith.constant 0 : index
    %29 = vector.load %arg2[%c4, %c0_27, %c0_28] : memref<9x8x4xf32, #tpu.memory_space<vmem>>, vector<1x8x4xf32>
    %30 = vector.shape_cast %29 : vector<1x8x4xf32> to vector<8x4xf32>
    %cst_29 = arith.constant dense<0.000000e+00> : vector<8x256xf32>
    %31 = tpu.matmul %30, %28, %cst_29 {dimension_numbers = #tpu.dot_dimension_numbers<[1], [0], [0], [1], [0, 0, 1, 1], [], []>} : vector<8x4xf32>, vector<4x256xf32>, vector<8x256xf32> -> vector<8x256xf32>
    %32 = arith.addf %26, %31 : vector<8x256xf32>
    %c0_30 = arith.constant 0 : index
    %c0_31 = arith.constant 0 : index
    %c33 = arith.constant 33 : index
    %33 = vector.load %arg1[%c0_30, %c0_31, %c33] : memref<1x4x290xf32, #tpu.memory_space<vmem>>, vector<1x4x256xf32>
    %34 = vector.shape_cast %33 : vector<1x4x256xf32> to vector<4x256xf32>
    %c7 = arith.constant 7 : index
    %c0_32 = arith.constant 0 : index
    %c0_33 = arith.constant 0 : index
    %35 = vector.load %arg2[%c7, %c0_32, %c0_33] : memref<9x8x4xf32, #tpu.memory_space<vmem>>, vector<1x8x4xf32>
    %36 = vector.shape_cast %35 : vector<1x8x4xf32> to vector<8x4xf32>
    %cst_34 = arith.constant dense<0.000000e+00> : vector<8x256xf32>
    %37 = tpu.matmul %36, %34, %cst_34 {dimension_numbers = #tpu.dot_dimension_numbers<[1], [0], [0], [1], [0, 0, 1, 1], [], []>} : vector<8x4xf32>, vector<4x256xf32>, vector<8x256xf32> -> vector<8x256xf32>
    %38 = arith.addf %32, %37 : vector<8x256xf32>
    %39 = arith.addf %21, %38 : vector<8x256xf32>
    %c0_35 = arith.constant 0 : index
    %c0_36 = arith.constant 0 : index
    %c2 = arith.constant 2 : index
    %40 = vector.load %arg1[%c0_35, %c0_36, %c2] : memref<1x4x290xf32, #tpu.memory_space<vmem>>, vector<1x4x256xf32>
    %41 = vector.shape_cast %40 : vector<1x4x256xf32> to vector<4x256xf32>
    %c2_37 = arith.constant 2 : index
    %c0_38 = arith.constant 0 : index
    %c0_39 = arith.constant 0 : index
    %42 = vector.load %arg2[%c2_37, %c0_38, %c0_39] : memref<9x8x4xf32, #tpu.memory_space<vmem>>, vector<1x8x4xf32>
    %43 = vector.shape_cast %42 : vector<1x8x4xf32> to vector<8x4xf32>
    %cst_40 = arith.constant dense<0.000000e+00> : vector<8x256xf32>
    %44 = tpu.matmul %43, %41, %cst_40 {dimension_numbers = #tpu.dot_dimension_numbers<[1], [0], [0], [1], [0, 0, 1, 1], [], []>} : vector<8x4xf32>, vector<4x256xf32>, vector<8x256xf32> -> vector<8x256xf32>
    %c0_41 = arith.constant 0 : index
    %c0_42 = arith.constant 0 : index
    %c18 = arith.constant 18 : index
    %45 = vector.load %arg1[%c0_41, %c0_42, %c18] : memref<1x4x290xf32, #tpu.memory_space<vmem>>, vector<1x4x256xf32>
    %46 = vector.shape_cast %45 : vector<1x4x256xf32> to vector<4x256xf32>
    %c5 = arith.constant 5 : index
    %c0_43 = arith.constant 0 : index
    %c0_44 = arith.constant 0 : index
    %47 = vector.load %arg2[%c5, %c0_43, %c0_44] : memref<9x8x4xf32, #tpu.memory_space<vmem>>, vector<1x8x4xf32>
    %48 = vector.shape_cast %47 : vector<1x8x4xf32> to vector<8x4xf32>
    %cst_45 = arith.constant dense<0.000000e+00> : vector<8x256xf32>
    %49 = tpu.matmul %48, %46, %cst_45 {dimension_numbers = #tpu.dot_dimension_numbers<[1], [0], [0], [1], [0, 0, 1, 1], [], []>} : vector<8x4xf32>, vector<4x256xf32>, vector<8x256xf32> -> vector<8x256xf32>
    %50 = arith.addf %44, %49 : vector<8x256xf32>
    %c0_46 = arith.constant 0 : index
    %c0_47 = arith.constant 0 : index
    %c34 = arith.constant 34 : index
    %51 = vector.load %arg1[%c0_46, %c0_47, %c34] : memref<1x4x290xf32, #tpu.memory_space<vmem>>, vector<1x4x256xf32>
    %52 = vector.shape_cast %51 : vector<1x4x256xf32> to vector<4x256xf32>
    %c8 = arith.constant 8 : index
    %c0_48 = arith.constant 0 : index
    %c0_49 = arith.constant 0 : index
    %53 = vector.load %arg2[%c8, %c0_48, %c0_49] : memref<9x8x4xf32, #tpu.memory_space<vmem>>, vector<1x8x4xf32>
    %54 = vector.shape_cast %53 : vector<1x8x4xf32> to vector<8x4xf32>
    %cst_50 = arith.constant dense<0.000000e+00> : vector<8x256xf32>
    %55 = tpu.matmul %54, %52, %cst_50 {dimension_numbers = #tpu.dot_dimension_numbers<[1], [0], [0], [1], [0, 0, 1, 1], [], []>} : vector<8x4xf32>, vector<4x256xf32>, vector<8x256xf32> -> vector<8x256xf32>
    %56 = arith.addf %50, %55 : vector<8x256xf32>
    %c1_51 = arith.constant 1 : index
    %c0_52 = arith.constant 0 : index
    %57 = vector.load %arg3[%c1_51, %c0_52] : memref<2x256xf32, #tpu.memory_space<vmem>>, vector<1x256xf32>
    %58 = vector.broadcast %57 : vector<1x256xf32> to vector<8x256xf32>
    %59 = arith.mulf %56, %58 : vector<8x256xf32>
    %60 = arith.addf %39, %59 : vector<8x256xf32>
    %c0_53 = arith.constant 0 : index
    %c0_54 = arith.constant 0 : index
    %c0_55 = arith.constant 0 : index
    %61 = vector.load %arg5[%c0_53, %c0_54, %c0_55] : memref<1x8x256xf32, #tpu.memory_space<vmem>>, vector<1x8x256xf32>
    %62 = vector.shape_cast %61 : vector<1x8x256xf32> to vector<8x256xf32>
    %63 = vector.shape_cast %60 : vector<8x256xf32> to vector<1x8x256xf32>
    tpu.vector_store %arg5[%c0_53, %c0_54, %c0_55], %63 {strides = array<i32>} : memref<1x8x256xf32, #tpu.memory_space<vmem>>, vector<1x8x256xf32>,
    return
  }
  func.func @transform_0(%arg0: i32) -> (i32, i32, i32) {
    %c0_i32 = arith.constant 0 : i32
    %c0_i32_0 = arith.constant 0 : i32
    %c0_i32_1 = arith.constant 0 : i32
    return %arg0, %c0_i32, %c0_i32_0 : i32, i32, i32
  }
  func.func @transform_1(%arg0: i32) -> (i32, i32, i32) {
    %c0_i32 = arith.constant 0 : i32
    %c0_i32_0 = arith.constant 0 : i32
    %c0_i32_1 = arith.constant 0 : i32
    %c0_i32_2 = arith.constant 0 : i32
    return %c0_i32, %c0_i32_0, %c0_i32_1 : i32, i32, i32
  }
  func.func @transform_2(%arg0: i32) -> (i32, i32) {
    %c0_i32 = arith.constant 0 : i32
    %c0_i32_0 = arith.constant 0 : i32
    %c0_i32_1 = arith.constant 0 : i32
    return %c0_i32, %c0_i32_0 : i32, i32
  }
  func.func @transform_3(%arg0: i32) -> (i32, i32) {
    %c0_i32 = arith.constant 0 : i32
    %c0_i32_0 = arith.constant 0 : i32
    %c0_i32_1 = arith.constant 0 : i32
    return %c0_i32, %c0_i32_0 : i32, i32
  }
  func.func @transform_4(%arg0: i32) -> (i32, i32, i32) {
    %c0_i32 = arith.constant 0 : i32
    %c0_i32_0 = arith.constant 0 : i32
    %c0_i32_1 = arith.constant 0 : i32
    return %arg0, %c0_i32, %c0_i32_0 : i32, i32, i32
  }
}

</mosaic_0001>

<llo_original>
// kernel: coord_conv.1
$region0: #{coord_conv.1}
  #allocation0 [shape = 'u32[]', space=smem, size = 0x4, offset = 0x4, fixed_abs, tag = 'smem constant byte address 0x4 - core index']
  #allocation1 [shape = 'u32[144,128]{1,0:T(1,128)}', space=vmem, size = 0x12000, scoped, tag = 'internal scratch']
  %s0 = inlined_call_operand.vmem [shape: f32[2,4,290], index: 0, kind: input, shape index: {}]
  %s1 = inlined_call_operand.vmem [shape: f32[9,8,4], index: 1, kind: input, shape index: {}]
  %s2 = inlined_call_operand.vmem [shape: f32[2,256], index: 2, kind: input, shape index: {}]
  %s3 = inlined_call_operand.vmem [shape: f32[8,256], index: 3, kind: input, shape index: {}]
  %s4 = inlined_call_operand.vmem [shape: f32[2,8,256], index: 4, kind: output, shape index: {}]
  %s5 = sld [smem:[#allocation0]]
  $region49: #{coord_conv.1} parent=0
    _
  %s7 = ssub.s32 1, %s5
  %s8 = scalar_select 0, %s7, %s5
  loop: start=0, step=1, limit=4
  $region2: #{coord_conv.1} parent=0 // loop_pre_header
    _
  $region3: #{coord_conv.1} parent=0 // loop_header
    %s10 = sphi 0, %s14
    %p11 = scmp.ge.s32.totalorder %s10, 4
    %s20 = sphi 0, %s22
    %s23 = sphi 0, %s20
    %s24 = sphi 0, %s23
    %s40 = sphi 0, %s24
    %s44 = sphi 0, %s44
    %s46 = sphi 0, %s44
    %s47 = sphi 0, %s46
    %s61 = sphi 0, %s47
    %s65 = sphi 0, %s65
    %s67 = sphi 0, %s65
    %s68 = sphi 0, %s67
    %s82 = sphi 0, %s68
    %s86 = sphi 0, %s86
    %s88 = sphi 0, %s86
    %s89 = sphi 0, %s88
    %s103 = sphi 0, %s89
    %s109 = sphi 0, %s111
    %s112 = sphi 0, %s109
    %s113 = sphi 0, %s112
    %s129 = sphi 0, %s113
  $region4: #{coord_conv.1} parent=0 // loop_header_branch
    %13 = sbr.rel (%p11) target = $region8
  $region5: #{coord_conv.1} parent=0 // loop_body
    %s15 = ssub.s32 %s10, 1
    %s16 = ssub.s32 %s10, 2
    %s17 = sadd.s32 %s10, 1
    %s18 = ssub.s32 %s10, %s17
    %p19 = scmp.eq.s32.totalorder %s18, 0
    %s21 = sadd.s32 %s20, 1
    %s22 = scalar_select %p19, %s20, %s21
    %p25 = pneg %p19
    %p26 = scmp.eq.s32.totalorder %s10, 1
    %p27 = por %p25, %p26
    %p28 = scmp.ne.s32.totalorder %s20, %s23
    %p29 = scmp.eq.s32.totalorder %s10, 0
    %p30 = por %p28, %p29
    %p31 = scmp.ne.s32.totalorder %s20, %s23
    %p32 = scmp.eq.s32.totalorder %s15, 1
    %p33 = por %p31, %p32
    %p34 = scmp.ne.s32.totalorder %s23, %s24
    %p35 = scmp.eq.s32.totalorder %s15, 0
    %p36 = por %p34, %p35
    %p37 = scmp.ne.s32.totalorder %s23, %s24
    %p38 = scmp.eq.s32.totalorder %s16, 1
    %p39 = por %p37, %p38
    %p41 = scmp.ne.s32.totalorder %s24, %s40
    %p42 = scmp.eq.s32.totalorder %s16, 0
    %p43 = por %p41, %p42
    %s45 = sadd.s32 %s44, 1
    %p48 = scmp.eq.s32.totalorder %s10, 1
    %p49 = scmp.ne.s32.totalorder %s44, %s46
    %p50 = scmp.eq.s32.totalorder %s10, 0
    %p51 = por %p49, %p50
    %p52 = scmp.ne.s32.totalorder %s44, %s46
    %p53 = scmp.eq.s32.totalorder %s15, 1
    %p54 = por %p52, %p53
    %p55 = scmp.ne.s32.totalorder %s46, %s47
    %p56 = scmp.eq.s32.totalorder %s15, 0
    %p57 = por %p55, %p56
    %p58 = scmp.ne.s32.totalorder %s46, %s47
    %p59 = scmp.eq.s32.totalorder %s16, 1
    %p60 = por %p58, %p59
    %p62 = scmp.ne.s32.totalorder %s47, %s61
    %p63 = scmp.eq.s32.totalorder %s16, 0
    %p64 = por %p62, %p63
    %s66 = sadd.s32 %s65, 1
    %p69 = scmp.eq.s32.totalorder %s10, 1
    %p70 = scmp.ne.s32.totalorder %s65, %s67
    %p71 = scmp.eq.s32.totalorder %s10, 0
    %p72 = por %p70, %p71
    %p73 = scmp.ne.s32.totalorder %s65, %s67
    %p74 = scmp.eq.s32.totalorder %s15, 1
    %p75 = por %p73, %p74
    %p76 = scmp.ne.s32.totalorder %s67, %s68
    %p77 = scmp.eq.s32.totalorder %s15, 0
    %p78 = por %p76, %p77
    %p79 = scmp.ne.s32.totalorder %s67, %s68
    %p80 = scmp.eq.s32.totalorder %s16, 1
    %p81 = por %p79, %p80
    %p83 = scmp.ne.s32.totalorder %s68, %s82
    %p84 = scmp.eq.s32.totalorder %s16, 0
    %p85 = por %p83, %p84
    %s87 = sadd.s32 %s86, 1
    %p90 = scmp.eq.s32.totalorder %s10, 1
    %p91 = scmp.ne.s32.totalorder %s86, %s88
    %p92 = scmp.eq.s32.totalorder %s10, 0
    %p93 = por %p91, %p92
    %p94 = scmp.ne.s32.totalorder %s86, %s88
    %p95 = scmp.eq.s32.totalorder %s15, 1
    %p96 = por %p94, %p95
    %p97 = scmp.ne.s32.totalorder %s88, %s89
    %p98 = scmp.eq.s32.totalorder %s15, 0
    %p99 = por %p97, %p98
    %p100 = scmp.ne.s32.totalorder %s88, %s89
    %p101 = scmp.eq.s32.totalorder %s16, 1
    %p102 = por %p100, %p101
    %p104 = scmp.ne.s32.totalorder %s89, %s103
    %p105 = scmp.eq.s32.totalorder %s16, 0
    %p106 = por %p104, %p105
    %s107 = ssub.s32 %s10, %s17
    %p108 = scmp.eq.s32.totalorder %s107, 0
    %s110 = sadd.s32 %s109, 1
    %s111 = scalar_select %p108, %s109, %s110
    %p114 = pneg %p108
    %p115 = scmp.eq.s32.totalorder %s10, 1
    %p116 = por %p114, %p115
    %p117 = scmp.ne.s32.totalorder %s109, %s112
    %p118 = scmp.eq.s32.totalorder %s10, 0
    %p119 = por %p117, %p118
    %p120 = scmp.ne.s32.totalorder %s109, %s112
    %p121 = scmp.eq.s32.totalorder %s15, 1
    %p122 = por %p120, %p121
    %p123 = scmp.ne.s32.totalorder %s112, %s113
    %p124 = scmp.eq.s32.totalorder %s15, 0
    %p125 = por %p123, %p124
    %p126 = scmp.ne.s32.totalorder %s112, %s113
    %p127 = scmp.eq.s32.totalorder %s16, 1
    %p128 = por %p126, %p127
    %p130 = scmp.ne.s32.totalorder %s113, %s129
    %p131 = scmp.eq.s32.totalorder %s16, 0
    %p132 = por %p130, %p131
    %p133 = scmp.le.s32.totalorder 1, %s10
    %p134 = scmp.lt.s32.totalorder %s10, 3
    %p135 = pnand %p133, %p134
    %p136 = pneg %p135
    // Predicated region
    $region9: #{coord_conv.1} parent=5 // pred_check
      _
    $region10: #{coord_conv.1} parent=5 // pred_check_branch
      %138 = sbr.rel (%p135) target = $region12
    $region11: #{coord_conv.1} parent=5 // pred_region
      %s139 = ssub.s32 %s10, 1
      // Predicated region
      $region13: #{coord_conv.1} parent=11 // pred_check
        %p140 = pneg %p57
      $region14: #{coord_conv.1} parent=11 // pred_check_branch
        %142 = sbr.rel (%p140) target = $region16
      $region15: #{coord_conv.1} parent=11 // pred_region
        _
      $region16: #{coord_conv.1} parent=11 // pred_fallthru
        _
      // Predicated region
      $region17: #{coord_conv.1} parent=11 // pred_check
        %p143 = pneg %p78
      $region18: #{coord_conv.1} parent=11 // pred_check_branch
        %145 = sbr.rel (%p143) target = $region20
      $region19: #{coord_conv.1} parent=11 // pred_region
        _
      $region20: #{coord_conv.1} parent=11 // pred_fallthru
        _
      // Predicated region
      $region21: #{coord_conv.1} parent=11 // pred_check
        %p146 = pneg %p99
      $region22: #{coord_conv.1} parent=11 // pred_check_branch
        %148 = sbr.rel (%p146) target = $region24
      $region23: #{coord_conv.1} parent=11 // pred_region
        _
      $region24: #{coord_conv.1} parent=11 // pred_fallthru
        _
    $region12: #{coord_conv.1} parent=5 // pred_fallthru
      _
    %p149 = scmp.lt.s32.totalorder %s10, 2
    // Predicated region
    $region25: #{coord_conv.1} parent=5 // pred_check
      %p150 = pneg %p149
    $region26: #{coord_conv.1} parent=5 // pred_check_branch
      %152 = sbr.rel (%p150) target = $region28
    $region27: #{coord_conv.1} parent=5 // pred_region
      // Predicated region
      $region29: #{coord_conv.1} parent=27 // pred_check
        %p153 = pneg %p30
      $region30: #{coord_conv.1} parent=27 // pred_check_branch
        %155 = sbr.rel (%p153) target = $region32
      $region31: #{coord_conv.1} parent=27 // pred_region
        %p156 = scmp.lt.s32.totalorder %s10, 1
        %s157 = scalar_select %p156, %s10, 1
        %s158 = smul.addr %s157, 3
        %s159 = smul.addr %s158, 4
        %s160 = scalar_lea.vmem %s0, %s159
      $region32: #{coord_conv.1} parent=27 // pred_fallthru
        _
    $region28: #{coord_conv.1} parent=5 // pred_fallthru
      _
    %p161 = scmp.le.s32.totalorder 1, %s10
    %p162 = scmp.lt.s32.totalorder %s10, 3
    %p163 = pnand %p161, %p162
    %p164 = pneg %p163
    // Predicated region
    $region33: #{coord_conv.1} parent=5 // pred_check
      _
    $region34: #{coord_conv.1} parent=5 // pred_check_branch
      %166 = sbr.rel (%p163) target = $region36
    $region35: #{coord_conv.1} parent=5 // pred_region
      %s167 = ssub.s32 %s10, 1
      %p168 = scmp.lt.s32.totalorder %s15, 1
      %s169 = scalar_select %p168, %s15, 1
      %s170 = smul.addr %s169, 3
      %s171 = smul.addr %s170, 4
      %s172 = scalar_lea.vmem %s0, %s171
      %p173 = pneg %p36
      %p174 = pneg %p33
      %p175 = pneg %p57
      %p176 = pneg %p54
      %p177 = pneg %p78
      %p178 = pneg %p75
      %p179 = pneg %p99
      %p180 = pneg %p96
      %p181 = pneg %p125
      %p182 = pneg %p122
      %p183 = scmp.lt.s32.totalorder %s15, 1
      %s184 = scalar_select %p183, %s15, 1
      %s185 = smul.addr %s184, 2
      %s186 = smul.addr %s185, 8
      %s187 = scalar_lea.vmem %s4, %s186
      %p188 = scmp.lt.s32.totalorder %s15, 1
      %s189 = scalar_select %p188, %s15, 1
      %s190 = smul.addr %s189, 3
      %s191 = smul.addr %s190, 4
      %s192 = scalar_lea.vmem %s0, %s191
      %p193 = scmp.lt.s32.totalorder %s15, 1
      %s194 = scalar_select %p193, %s15, 1
      %s195 = smul.addr %s194, 2
      %s196 = smul.addr %s195, 8
      %s197 = scalar_lea.vmem %s4, %s196
      %v198 = vld [vmem:[%s3] sm:$0xff]
      %v199 = vld [vmem:[%s3 + $0x8] sm:$0xff]
      %v200 = vld [vmem:[%s192] sm:$0xff]
      %v201 = vld [vmem:[%s1] sm:$0xff]
      %v202 = vld [vmem:[%s192 + $0x8] sm:$0xf]
      %s203 = scalar_lea.vmem %s1, 24
      %v204 = vld [vmem:[%s203] sm:$0xff]
      %v207 = vcombine.high %v200, %v200
      %208 = vrot.lane.b32.xlu0 %v200, 112
      %v209 = vpop.permute.xlu0 %208
      %210 = vrot.lane.b32.xlu0 %v207, 112
      %v211 = vpop.permute.xlu0 %210
      %212 = vrot.lane.b32.xlu0 %v202, 112
      %v213 = vpop.permute.xlu0 %212
      %vm214 = vcmask 916480
      %v215 = vsel %vm214, %v209, %v211
      %v216 = vsel %vm214, %v211, %v213
      %vm217 = vcmask 31744
      %v219 = vsel %vm217, %v204, 0
      %vm221 = vcmask 1043456
      %v222 = vsel %vm221, %v215, 0
      %v224 = vsel %vm221, %v216, 0
      %226 = vmatprep.subr.mxu0 %v224
      %227 = vmatpush1.msra.mxu0 %v222
      %228 = vmatprep.subr.mxu0 0.0
      %229 = vmatpush1.msra.mxu0 0.0
      %230 = vmatprep.subr.mxu0 0.0
      %231 = vmatpush1.msra.mxu0 0.0
      %232 = vmatprep.subr.mxu0 0.0
      %233 = vmatpush1.msra.mxu0 0.0
      %234 = vmatprep.subr.mxu0 0.0
      %235 = vmatpush1.msra.mxu0 0.0
      %236 = vmatprep.subr.mxu0 0.0
      %237 = vmatpush1.msra.mxu0 0.0
      %238 = vmatprep.subr.mxu0 0.0
      %239 = vmatpush1.msra.mxu0 0.0
      %240 = vmatprep.subr.mxu0 0.0
      %241 = vmatpush1.msra.mxu0 0.0
      %242 = vmatprep.subr.mxu0 0.0
      %243 = vmatpush1.msra.mxu0 0.0
      %244 = vmatprep.subr.mxu0 0.0
      %245 = vmatpush1.msra.mxu0 0.0
      %246 = vmatprep.subr.mxu0 0.0
      %247 = vmatpush1.msra.mxu0 0.0
      %248 = vmatprep.subr.mxu0 0.0
      %249 = vmatpush1.msra.mxu0 0.0
      %250 = vmatprep.subr.mxu0 0.0
      %251 = vmatpush1.msra.mxu0 0.0
      %252 = vmatprep.subr.mxu0 0.0
      %253 = vmatpush1.msra.mxu0 0.0
      %254 = vmatprep.subr.mxu0 0.0
      %255 = vmatpush1.msra.mxu0 0.0
      %256 = vmatprep.subr.mxu0 0.0
      %257 = vmatpush1.msra.mxu0 0.0
      %258 = vmatprep.subr.mxu0 0.0
      %259 = vmatpush1.msra.mxu0 0.0
      %260 = vmatprep.subr.mxu0 0.0
      %261 = vmatpush1.msra.mxu0 0.0
      %262 = vmatprep.subr.mxu0 0.0
      %263 = vmatpush1.msra.mxu0 0.0
      %264 = vmatprep.subr.mxu0 0.0
      %265 = vmatpush1.msra.mxu0 0.0
      %266 = vmatprep.subr.mxu0 0.0
      %267 = vmatpush1.msra.mxu0 0.0
      %268 = vmatprep.subr.mxu0 0.0
      %269 = vmatpush1.msra.mxu0 0.0
      %270 = vmatprep.subr.mxu0 0.0
      %271 = vmatpush1.msra.mxu0 0.0
      %272 = vmatprep.subr.mxu0 0.0
      %273 = vmatpush1.msra.mxu0 0.0
      %274 = vmatprep.subr.mxu0 0.0
      %275 = vmatpush1.msra.mxu0 0.0
      %276 = vmatprep.subr.mxu0 0.0
      %277 = vmatpush1.msra.mxu0 0.0
      %278 = vmatprep.subr.mxu0 0.0
      %279 = vmatpush1.msra.mxu0 0.0
      %280 = vmatprep.subr.mxu0 0.0
      %281 = vmatpush1.msra.mxu0 0.0
      %282 = vmatprep.subr.mxu0 0.0
      %283 = vmatpush1.msra.mxu0 0.0
      %284 = vmatprep.subr.mxu0 0.0
      %285 = vmatpush1.msra.mxu0 0.0
      %286 = vmatprep.subr.mxu0 0.0
      %287 = vmatpush1.msra.mxu0 0.0
      %288 = vmatprep.subr.mxu0 0.0
      %289 = vmatpush1.msra.mxu0 0.0
      %290 = vmatprep.mubr.f32.mxu0 0.0
      %291 = vmatmul.mubr.f32.gmra.mrb[0].mxu0 %v219
      %v292 = vpop.f32.mrb[0].mxu0
      %v293 = vadd.f32 0.0, %v292
      %v294 = vpop.f32.mrb[0].mxu0
      %v295 = vadd.f32 0.0, %v294
      %296 = vdwg.mxu0
      %v298 = vsel %vm217, %v201, 0
      %v300 = vsel %vm221, %v200, 0
      %v302 = vsel %vm221, %v207, 0
      %304 = vmatprep.subr.mxu0 %v302
      %305 = vmatpush1.msra.mxu0 %v300
      %306 = vmatprep.subr.mxu0 0.0
      %307 = vmatpush1.msra.mxu0 0.0
      %308 = vmatprep.subr.mxu0 0.0
      %309 = vmatpush1.msra.mxu0 0.0
      %310 = vmatprep.subr.mxu0 0.0
      %311 = vmatpush1.msra.mxu0 0.0
      %312 = vmatprep.subr.mxu0 0.0
      %313 = vmatpush1.msra.mxu0 0.0
      %314 = vmatprep.subr.mxu0 0.0
      %315 = vmatpush1.msra.mxu0 0.0
      %316 = vmatprep.subr.mxu0 0.0
      %317 = vmatpush1.msra.mxu0 0.0
      %318 = vmatprep.subr.mxu0 0.0
      %319 = vmatpush1.msra.mxu0 0.0
      %320 = vmatprep.subr.mxu0 0.0
      %321 = vmatpush1.msra.mxu0 0.0
      %322 = vmatprep.subr.mxu0 0.0
      %323 = vmatpush1.msra.mxu0 0.0
      %324 = vmatprep.subr.mxu0 0.0
      %325 = vmatpush1.msra.mxu0 0.0
      %326 = vmatprep.subr.mxu0 0.0
      %327 = vmatpush1.msra.mxu0 0.0
      %328 = vmatprep.subr.mxu0 0.0
      %329 = vmatpush1.msra.mxu0 0.0
      %330 = vmatprep.subr.mxu0 0.0
      %331 = vmatpush1.msra.mxu0 0.0
      %332 = vmatprep.subr.mxu0 0.0
      %333 = vmatpush1.msra.mxu0 0.0
      %334 = vmatprep.subr.mxu0 0.0
      %335 = vmatpush1.msra.mxu0 0.0
      %336 = vmatprep.subr.mxu0 0.0
      %337 = vmatpush1.msra.mxu0 0.0
      %338 = vmatprep.subr.mxu0 0.0
      %339 = vmatpush1.msra.mxu0 0.0
      %340 = vmatprep.subr.mxu0 0.0
      %341 = vmatpush1.msra.mxu0 0.0
      %342 = vmatprep.subr.mxu0 0.0
      %343 = vmatpush1.msra.mxu0 0.0
      %344 = vmatprep.subr.mxu0 0.0
      %345 = vmatpush1.msra.mxu0 0.0
      %346 = vmatprep.subr.mxu0 0.0
      %347 = vmatpush1.msra.mxu0 0.0
      %348 = vmatprep.subr.mxu0 0.0
      %349 = vmatpush1.msra.mxu0 0.0
      %350 = vmatprep.subr.mxu0 0.0
      %351 = vmatpush1.msra.mxu0 0.0
      %352 = vmatprep.subr.mxu0 0.0
      %353 = vmatpush1.msra.mxu0 0.0
      %354 = vmatprep.subr.mxu0 0.0
      %355 = vmatpush1.msra.mxu0 0.0
      %356 = vmatprep.subr.mxu0 0.0
      %357 = vmatpush1.msra.mxu0 0.0
      %358 = vmatprep.subr.mxu0 0.0
      %359 = vmatpush1.msra.mxu0 0.0
      %360 = vmatprep.subr.mxu0 0.0
      %361 = vmatpush1.msra.mxu0 0.0
      %362 = vmatprep.subr.mxu0 0.0
      %363 = vmatpush1.msra.mxu0 0.0
      %364 = vmatprep.subr.mxu0 0.0
      %365 = vmatpush1.msra.mxu0 0.0
      %366 = vmatprep.subr.mxu0 0.0
      %367 = vmatpush1.msra.mxu0 0.0
      %368 = vmatprep.mubr.f32.mxu0 0.0
      %369 = vmatmul.mubr.f32.gmra.mrb[0].mxu0 %v298
      %v370 = vpop.f32.mrb[0].mxu0
      %v371 = vadd.f32 %v293, %v370
      %v372 = vpop.f32.mrb[0].mxu0
      %v373 = vadd.f32 %v295, %v372
      %374 = vdwg.mxu0
      %v375 = vld [vmem:[%s192] sm:$0xff]
      %v376 = vld [vmem:[%s192 + $0x8] sm:$0xf]
      %s377 = scalar_lea.vmem %s1, 48
      %v378 = vld [vmem:[%s377] sm:$0xff]
      %v381 = vcombine.high %v375, %v375
      %382 = vrot.lane.b32.xlu0 %v375, 96
      %v383 = vpop.permute.xlu0 %382
      %384 = vrot.lane.b32.xlu0 %v381, 96
      %v385 = vpop.permute.xlu0 %384
      %386 = vrot.lane.b32.xlu0 %v376, 96
      %v387 = vpop.permute.xlu0 %386
      %vm388 = vcmask 785408
      %v389 = vsel %vm388, %v383, %v385
      %v390 = vsel %vm388, %v385, %v387
      %v392 = vsel %vm217, %v378, 0
      %v394 = vsel %vm221, %v389, 0
      %v396 = vsel %vm221, %v390, 0
      %398 = vmatprep.subr.mxu0 %v396
      %399 = vmatpush1.msra.mxu0 %v394
      %400 = vmatprep.subr.mxu0 0.0
      %401 = vmatpush1.msra.mxu0 0.0
      %402 = vmatprep.subr.mxu0 0.0
      %403 = vmatpush1.msra.mxu0 0.0
      %404 = vmatprep.subr.mxu0 0.0
      %405 = vmatpush1.msra.mxu0 0.0
      %406 = vmatprep.subr.mxu0 0.0
      %407 = vmatpush1.msra.mxu0 0.0
      %408 = vmatprep.subr.mxu0 0.0
      %409 = vmatpush1.msra.mxu0 0.0
      %410 = vmatprep.subr.mxu0 0.0
      %411 = vmatpush1.msra.mxu0 0.0
      %412 = vmatprep.subr.mxu0 0.0
      %413 = vmatpush1.msra.mxu0 0.0
      %414 = vmatprep.subr.mxu0 0.0
      %415 = vmatpush1.msra.mxu0 0.0
      %416 = vmatprep.subr.mxu0 0.0
      %417 = vmatpush1.msra.mxu0 0.0
      %418 = vmatprep.subr.mxu0 0.0
      %419 = vmatpush1.msra.mxu0 0.0
      %420 = vmatprep.subr.mxu0 0.0
      %421 = vmatpush1.msra.mxu0 0.0
      %422 = vmatprep.subr.mxu0 0.0
      %423 = vmatpush1.msra.mxu0 0.0
      %424 = vmatprep.subr.mxu0 0.0
      %425 = vmatpush1.msra.mxu0 0.0
      %426 = vmatprep.subr.mxu0 0.0
      %427 = vmatpush1.msra.mxu0 0.0
      %428 = vmatprep.subr.mxu0 0.0
      %429 = vmatpush1.msra.mxu0 0.0
      %430 = vmatprep.subr.mxu0 0.0
      %431 = vmatpush1.msra.mxu0 0.0
      %432 = vmatprep.subr.mxu0 0.0
      %433 = vmatpush1.msra.mxu0 0.0
      %434 = vmatprep.subr.mxu0 0.0
      %435 = vmatpush1.msra.mxu0 0.0
      %436 = vmatprep.subr.mxu0 0.0
      %437 = vmatpush1.msra.mxu0 0.0
      %438 = vmatprep.subr.mxu0 0.0
      %439 = vmatpush1.msra.mxu0 0.0
      %440 = vmatprep.subr.mxu0 0.0
      %441 = vmatpush1.msra.mxu0 0.0
      %442 = vmatprep.subr.mxu0 0.0
      %443 = vmatpush1.msra.mxu0 0.0
      %444 = vmatprep.subr.mxu0 0.0
      %445 = vmatpush1.msra.mxu0 0.0
      %446 = vmatprep.subr.mxu0 0.0
      %447 = vmatpush1.msra.mxu0 0.0
      %448 = vmatprep.subr.mxu0 0.0
      %449 = vmatpush1.msra.mxu0 0.0
      %450 = vmatprep.subr.mxu0 0.0
      %451 = vmatpush1.msra.mxu0 0.0
      %452 = vmatprep.subr.mxu0 0.0
      %453 = vmatpush1.msra.mxu0 0.0
      %454 = vmatprep.subr.mxu0 0.0
      %455 = vmatpush1.msra.mxu0 0.0
      %456 = vmatprep.subr.mxu0 0.0
      %457 = vmatpush1.msra.mxu0 0.0
      %458 = vmatprep.subr.mxu0 0.0
      %459 = vmatpush1.msra.mxu0 0.0
      %460 = vmatprep.subr.mxu0 0.0
      %461 = vmatpush1.msra.mxu0 0.0
      %462 = vmatprep.mubr.f32.mxu0 0.0
      %463 = vmatmul.mubr.f32.gmra.mrb[0].mxu0 %v392
      %v464 = vpop.f32.mrb[0].mxu0
      %v465 = vadd.f32 0.0, %v464
      %v466 = vpop.f32.mrb[0].mxu0
      %v467 = vadd.f32 0.0, %v466
      %468 = vdwg.mxu0
      %v469 = vadd.f32 %v371, %v465
      %v470 = vadd.f32 %v373, %v467
      %v471 = vld [vmem:[%s2] ss:$2 sm:$0x3]
      %v473 = vlaneseq
      %v474 = vshrl.u32 %v473, 7
      %v475 = vsub.s32 0, %v474
      %v476 = vrot.slane %v471, %v475
      %v477 = vlaneseq
      %v478 = vshrl.u32 %v477, 7
      %v479 = vsub.s32 1, %v478
      %v480 = vrot.slane %v471, %v479
      %v483 = vmul.f32 %v469, %v476
      %v484 = vmul.f32 %v470, %v480
      %v485 = vadd.f32 %v198, %v483
      %v486 = vadd.f32 %v199, %v484
      %v487 = vld [vmem:[%s192] sm:$0xff]
      %v488 = vld [vmem:[%s192 + $0x8] sm:$0xf]
      %s489 = scalar_lea.vmem %s1, 8
      %v490 = vld [vmem:[%s489] sm:$0xff]
      %s491 = scalar_lea.vmem %s1, 32
      %v492 = vld [vmem:[%s491] sm:$0xff]
      %v495 = vcombine.high %v487, %v487
      %496 = vrot.lane.b32.xlu0 %v487, 111
      %v497 = vpop.permute.xlu0 %496
      %498 = vrot.lane.b32.xlu0 %v495, 111
      %v499 = vpop.permute.xlu0 %498
      %500 = vrot.lane.b32.xlu0 %v488, 111
      %v501 = vpop.permute.xlu0 %500
      %vm502 = vcmask 908288
      %v503 = vsel %vm502, %v497, %v499
      %v504 = vsel %vm502, %v499, %v501
      %v506 = vsel %vm217, %v492, 0
      %v508 = vsel %vm221, %v503, 0
      %v510 = vsel %vm221, %v504, 0
      %512 = vmatprep.subr.mxu0 %v510
      %513 = vmatpush1.msra.mxu0 %v508
      %514 = vmatprep.subr.mxu0 0.0
      %515 = vmatpush1.msra.mxu0 0.0
      %516 = vmatprep.subr.mxu0 0.0
      %517 = vmatpush1.msra.mxu0 0.0
      %518 = vmatprep.subr.mxu0 0.0
      %519 = vmatpush1.msra.mxu0 0.0
      %520 = vmatprep.subr.mxu0 0.0
      %521 = vmatpush1.msra.mxu0 0.0
      %522 = vmatprep.subr.mxu0 0.0
      %523 = vmatpush1.msra.mxu0 0.0
      %524 = vmatprep.subr.mxu0 0.0
      %525 = vmatpush1.msra.mxu0 0.0
      %526 = vmatprep.subr.mxu0 0.0
      %527 = vmatpush1.msra.mxu0 0.0
      %528 = vmatprep.subr.mxu0 0.0
      %529 = vmatpush1.msra.mxu0 0.0
      %530 = vmatprep.subr.mxu0 0.0
      %531 = vmatpush1.msra.mxu0 0.0
      %532 = vmatprep.subr.mxu0 0.0
      %533 = vmatpush1.msra.mxu0 0.0
      %534 = vmatprep.subr.mxu0 0.0
      %535 = vmatpush1.msra.mxu0 0.0
      %536 = vmatprep.subr.mxu0 0.0
      %537 = vmatpush1.msra.mxu0 0.0
      %538 = vmatprep.subr.mxu0 0.0
      %539 = vmatpush1.msra.mxu0 0.0
      %540 = vmatprep.subr.mxu0 0.0
      %541 = vmatpush1.msra.mxu0 0.0
      %542 = vmatprep.subr.mxu0 0.0
      %543 = vmatpush1.msra.mxu0 0.0
      %544 = vmatprep.subr.mxu0 0.0
      %545 = vmatpush1.msra.mxu0 0.0
      %546 = vmatprep.subr.mxu0 0.0
      %547 = vmatpush1.msra.mxu0 0.0
      %548 = vmatprep.subr.mxu0 0.0
      %549 = vmatpush1.msra.mxu0 0.0
      %550 = vmatprep.subr.mxu0 0.0
      %551 = vmatpush1.msra.mxu0 0.0
      %552 = vmatprep.subr.mxu0 0.0
      %553 = vmatpush1.msra.mxu0 0.0
      %554 = vmatprep.subr.mxu0 0.0
      %555 = vmatpush1.msra.mxu0 0.0
      %556 = vmatprep.subr.mxu0 0.0
      %557 = vmatpush1.msra.mxu0 0.0
      %558 = vmatprep.subr.mxu0 0.0
      %559 = vmatpush1.msra.mxu0 0.0
      %560 = vmatprep.subr.mxu0 0.0
      %561 = vmatpush1.msra.mxu0 0.0
      %562 = vmatprep.subr.mxu0 0.0
      %563 = vmatpush1.msra.mxu0 0.0
      %564 = vmatprep.subr.mxu0 0.0
      %565 = vmatpush1.msra.mxu0 0.0
      %566 = vmatprep.subr.mxu0 0.0
      %567 = vmatpush1.msra.mxu0 0.0
      %568 = vmatprep.subr.mxu0 0.0
      %569 = vmatpush1.msra.mxu0 0.0
      %570 = vmatprep.subr.mxu0 0.0
      %571 = vmatpush1.msra.mxu0 0.0
      %572 = vmatprep.subr.mxu0 0.0
      %573 = vmatpush1.msra.mxu0 0.0
      %574 = vmatprep.subr.mxu0 0.0
      %575 = vmatpush1.msra.mxu0 0.0
      %576 = vmatprep.mubr.f32.mxu0 0.0
      %577 = vmatmul.mubr.f32.gmra.mrb[0].mxu0 %v506
      %v578 = vpop.f32.mrb[0].mxu0
      %v579 = vadd.f32 0.0, %v578
      %v580 = vpop.f32.mrb[0].mxu0
      %v581 = vadd.f32 0.0, %v580
      %582 = vdwg.mxu0
      %583 = vrot.lane.b32.xlu0 %v487, 127
      %v584 = vpop.permute.xlu0 %583
      %585 = vrot.lane.b32.xlu0 %v495, 127
      %v586 = vpop.permute.xlu0 %585
      %587 = vrot.lane.b32.xlu0 %v488, 127
      %v588 = vpop.permute.xlu0 %587
      %vm589 = vcmask 1039360
      %v590 = vsel %vm589, %v584, %v586
      %v591 = vsel %vm589, %v586, %v588
      %v593 = vsel %vm217, %v490, 0
      %v595 = vsel %vm221, %v590, 0
      %v597 = vsel %vm221, %v591, 0
      %599 = vmatprep.subr.mxu0 %v597
      %600 = vmatpush1.msra.mxu0 %v595
      %601 = vmatprep.subr.mxu0 0.0
      %602 = vmatpush1.msra.mxu0 0.0
      %603 = vmatprep.subr.mxu0 0.0
      %604 = vmatpush1.msra.mxu0 0.0
      %605 = vmatprep.subr.mxu0 0.0
      %606 = vmatpush1.msra.mxu0 0.0
      %607 = vmatprep.subr.mxu0 0.0
      %608 = vmatpush1.msra.mxu0 0.0
      %609 = vmatprep.subr.mxu0 0.0
      %610 = vmatpush1.msra.mxu0 0.0
      %611 = vmatprep.subr.mxu0 0.0
      %612 = vmatpush1.msra.mxu0 0.0
      %613 = vmatprep.subr.mxu0 0.0
      %614 = vmatpush1.msra.mxu0 0.0
      %615 = vmatprep.subr.mxu0 0.0
      %616 = vmatpush1.msra.mxu0 0.0
      %617 = vmatprep.subr.mxu0 0.0
      %618 = vmatpush1.msra.mxu0 0.0
      %619 = vmatprep.subr.mxu0 0.0
      %620 = vmatpush1.msra.mxu0 0.0
      %621 = vmatprep.subr.mxu0 0.0
      %622 = vmatpush1.msra.mxu0 0.0
      %623 = vmatprep.subr.mxu0 0.0
      %624 = vmatpush1.msra.mxu0 0.0
      %625 = vmatprep.subr.mxu0 0.0
      %626 = vmatpush1.msra.mxu0 0.0
      %627 = vmatprep.subr.mxu0 0.0
      %628 = vmatpush1.msra.mxu0 0.0
      %629 = vmatprep.subr.mxu0 0.0
      %630 = vmatpush1.msra.mxu0 0.0
      %631 = vmatprep.subr.mxu0 0.0
      %632 = vmatpush1.msra.mxu0 0.0
      %633 = vmatprep.subr.mxu0 0.0
      %634 = vmatpush1.msra.mxu0 0.0
      %635 = vmatprep.subr.mxu0 0.0
      %636 = vmatpush1.msra.mxu0 0.0
      %637 = vmatprep.subr.mxu0 0.0
      %638 = vmatpush1.msra.mxu0 0.0
      %639 = vmatprep.subr.mxu0 0.0
      %640 = vmatpush1.msra.mxu0 0.0
      %641 = vmatprep.subr.mxu0 0.0
      %642 = vmatpush1.msra.mxu0 0.0
      %643 = vmatprep.subr.mxu0 0.0
      %644 = vmatpush1.msra.mxu0 0.0
      %645 = vmatprep.subr.mxu0 0.0
      %646 = vmatpush1.msra.mxu0 0.0
      %647 = vmatprep.subr.mxu0 0.0
      %648 = vmatpush1.msra.mxu0 0.0
      %649 = vmatprep.subr.mxu0 0.0
      %650 = vmatpush1.msra.mxu0 0.0
      %651 = vmatprep.subr.mxu0 0.0
      %652 = vmatpush1.msra.mxu0 0.0
      %653 = vmatprep.subr.mxu0 0.0
      %654 = vmatpush1.msra.mxu0 0.0
      %655 = vmatprep.subr.mxu0 0.0
      %656 = vmatpush1.msra.mxu0 0.0
      %657 = vmatprep.subr.mxu0 0.0
      %658 = vmatpush1.msra.mxu0 0.0
      %659 = vmatprep.subr.mxu0 0.0
      %660 = vmatpush1.msra.mxu0 0.0
      %661 = vmatprep.subr.mxu0 0.0
      %662 = vmatpush1.msra.mxu0 0.0
      %663 = vmatprep.mubr.f32.mxu0 0.0
      %664 = vmatmul.mubr.f32.gmra.mrb[0].mxu0 %v593
      %v665 = vpop.f32.mrb[0].mxu0
      %v666 = vadd.f32 %v579, %v665
      %v667 = vpop.f32.mrb[0].mxu0
      %v668 = vadd.f32 %v581, %v667
      %669 = vdwg.mxu0
      %v670 = vld [vmem:[%s192] sm:$0xff]
      %v671 = vld [vmem:[%s192 + $0x8] sm:$0xf]
      %s672 = scalar_lea.vmem %s1, 56
      %v673 = vld [vmem:[%s672] sm:$0xff]
      %v676 = vcombine.high %v670, %v670
      %677 = vrot.lane.b32.xlu0 %v670, 95
      %v678 = vpop.permute.xlu0 %677
      %679 = vrot.lane.b32.xlu0 %v676, 95
      %v680 = vpop.permute.xlu0 %679
      %681 = vrot.lane.b32.xlu0 %v671, 95
      %v682 = vpop.permute.xlu0 %681
      %vm683 = vcmask 777216
      %v684 = vsel %vm683, %v678, %v680
      %v685 = vsel %vm683, %v680, %v682
      %v687 = vsel %vm217, %v673, 0
      %v689 = vsel %vm221, %v684, 0
      %v691 = vsel %vm221, %v685, 0
      %693 = vmatprep.subr.mxu0 %v691
      %694 = vmatpush1.msra.mxu0 %v689
      %695 = vmatprep.subr.mxu0 0.0
      %696 = vmatpush1.msra.mxu0 0.0
      %697 = vmatprep.subr.mxu0 0.0
      %698 = vmatpush1.msra.mxu0 0.0
      %699 = vmatprep.subr.mxu0 0.0
      %700 = vmatpush1.msra.mxu0 0.0
      %701 = vmatprep.subr.mxu0 0.0
      %702 = vmatpush1.msra.mxu0 0.0
      %703 = vmatprep.subr.mxu0 0.0
      %704 = vmatpush1.msra.mxu0 0.0
      %705 = vmatprep.subr.mxu0 0.0
      %706 = vmatpush1.msra.mxu0 0.0
      %707 = vmatprep.subr.mxu0 0.0
      %708 = vmatpush1.msra.mxu0 0.0
      %709 = vmatprep.subr.mxu0 0.0
      %710 = vmatpush1.msra.mxu0 0.0
      %711 = vmatprep.subr.mxu0 0.0
      %712 = vmatpush1.msra.mxu0 0.0
      %713 = vmatprep.subr.mxu0 0.0
      %714 = vmatpush1.msra.mxu0 0.0
      %715 = vmatprep.subr.mxu0 0.0
      %716 = vmatpush1.msra.mxu0 0.0
      %717 = vmatprep.subr.mxu0 0.0
      %718 = vmatpush1.msra.mxu0 0.0
      %719 = vmatprep.subr.mxu0 0.0
      %720 = vmatpush1.msra.mxu0 0.0
      %721 = vmatprep.subr.mxu0 0.0
      %722 = vmatpush1.msra.mxu0 0.0
      %723 = vmatprep.subr.mxu0 0.0
      %724 = vmatpush1.msra.mxu0 0.0
      %725 = vmatprep.subr.mxu0 0.0
      %726 = vmatpush1.msra.mxu0 0.0
      %727 = vmatprep.subr.mxu0 0.0
      %728 = vmatpush1.msra.mxu0 0.0
      %729 = vmatprep.subr.mxu0 0.0
      %730 = vmatpush1.msra.mxu0 0.0
      %731 = vmatprep.subr.mxu0 0.0
      %732 = vmatpush1.msra.mxu0 0.0
      %733 = vmatprep.subr.mxu0 0.0
      %734 = vmatpush1.msra.mxu0 0.0
      %735 = vmatprep.subr.mxu0 0.0
      %736 = vmatpush1.msra.mxu0 0.0
      %737 = vmatprep.subr.mxu0 0.0
      %738 = vmatpush1.msra.mxu0 0.0
      %739 = vmatprep.subr.mxu0 0.0
      %740 = vmatpush1.msra.mxu0 0.0
      %741 = vmatprep.subr.mxu0 0.0
      %742 = vmatpush1.msra.mxu0 0.0
      %743 = vmatprep.subr.mxu0 0.0
      %744 = vmatpush1.msra.mxu0 0.0
      %745 = vmatprep.subr.mxu0 0.0
      %746 = vmatpush1.msra.mxu0 0.0
      %747 = vmatprep.subr.mxu0 0.0
      %748 = vmatpush1.msra.mxu0 0.0
      %749 = vmatprep.subr.mxu0 0.0
      %750 = vmatpush1.msra.mxu0 0.0
      %751 = vmatprep.subr.mxu0 0.0
      %752 = vmatpush1.msra.mxu0 0.0
      %753 = vmatprep.subr.mxu0 0.0
      %754 = vmatpush1.msra.mxu0 0.0
      %755 = vmatprep.subr.mxu0 0.0
      %756 = vmatpush1.msra.mxu0 0.0
      %757 = vmatprep.mubr.f32.mxu0 0.0
      %758 = vmatmul.mubr.f32.gmra.mrb[0].mxu0 %v687
      %v759 = vpop.f32.mrb[0].mxu0
      %v760 = vadd.f32 0.0, %v759
      %v761 = vpop.f32.mrb[0].mxu0
      %v762 = vadd.f32 0.0, %v761
      %763 = vdwg.mxu0
      %v764 = vadd.f32 %v666, %v760
      %v765 = vadd.f32 %v668, %v762
      %v766 = vadd.f32 %v485, %v764
      %v767 = vadd.f32 %v486, %v765
      %v768 = vld [vmem:[%s192] sm:$0xff]
      %v769 = vld [vmem:[%s192 + $0x8] sm:$0xf]
      %s770 = scalar_lea.vmem %s1, 16
      %v771 = vld [vmem:[%s770] sm:$0xff]
      %s772 = scalar_lea.vmem %s1, 40
      %v773 = vld [vmem:[%s772] sm:$0xff]
      %v776 = vcombine.high %v768, %v768
      %777 = vrot.lane.b32.xlu0 %v768, 110
      %v778 = vpop.permute.xlu0 %777
      %779 = vrot.lane.b32.xlu0 %v776, 110
      %v780 = vpop.permute.xlu0 %779
      %781 = vrot.lane.b32.xlu0 %v769, 110
      %v782 = vpop.permute.xlu0 %781
      %vm783 = vcmask 900096
      %v784 = vsel %vm783, %v778, %v780
      %v785 = vsel %vm783, %v780, %v782
      %v787 = vsel %vm217, %v773, 0
      %v789 = vsel %vm221, %v784, 0
      %v791 = vsel %vm221, %v785, 0
      %793 = vmatprep.subr.mxu0 %v791
      %794 = vmatpush1.msra.mxu0 %v789
      %795 = vmatprep.subr.mxu0 0.0
      %796 = vmatpush1.msra.mxu0 0.0
      %797 = vmatprep.subr.mxu0 0.0
      %798 = vmatpush1.msra.mxu0 0.0
      %799 = vmatprep.subr.mxu0 0.0
      %800 = vmatpush1.msra.mxu0 0.0
      %801 = vmatprep.subr.mxu0 0.0
      %802 = vmatpush1.msra.mxu0 0.0
      %803 = vmatprep.subr.mxu0 0.0
      %804 = vmatpush1.msra.mxu0 0.0
      %805 = vmatprep.subr.mxu0 0.0
      %806 = vmatpush1.msra.mxu0 0.0
      %807 = vmatprep.subr.mxu0 0.0
      %808 = vmatpush1.msra.mxu0 0.0
      %809 = vmatprep.subr.mxu0 0.0
      %810 = vmatpush1.msra.mxu0 0.0
      %811 = vmatprep.subr.mxu0 0.0
      %812 = vmatpush1.msra.mxu0 0.0
      %813 = vmatprep.subr.mxu0 0.0
      %814 = vmatpush1.msra.mxu0 0.0
      %815 = vmatprep.subr.mxu0 0.0
      %816 = vmatpush1.msra.mxu0 0.0
      %817 = vmatprep.subr.mxu0 0.0
      %818 = vmatpush1.msra.mxu0 0.0
      %819 = vmatprep.subr.mxu0 0.0
      %820 = vmatpush1.msra.mxu0 0.0
      %821 = vmatprep.subr.mxu0 0.0
      %822 = vmatpush1.msra.mxu0 0.0
      %823 = vmatprep.subr.mxu0 0.0
      %824 = vmatpush1.msra.mxu0 0.0
      %825 = vmatprep.subr.mxu0 0.0
      %826 = vmatpush1.msra.mxu0 0.0
      %827 = vmatprep.subr.mxu0 0.0
      %828 = vmatpush1.msra.mxu0 0.0
      %829 = vmatprep.subr.mxu0 0.0
      %830 = vmatpush1.msra.mxu0 0.0
      %831 = vmatprep.subr.mxu0 0.0
      %832 = vmatpush1.msra.mxu0 0.0
      %833 = vmatprep.subr.mxu0 0.0
      %834 = vmatpush1.msra.mxu0 0.0
      %835 = vmatprep.subr.mxu0 0.0
      %836 = vmatpush1.msra.mxu0 0.0
      %837 = vmatprep.subr.mxu0 0.0
      %838 = vmatpush1.msra.mxu0 0.0
      %839 = vmatprep.subr.mxu0 0.0
      %840 = vmatpush1.msra.mxu0 0.0
      %841 = vmatprep.subr.mxu0 0.0
      %842 = vmatpush1.msra.mxu0 0.0
      %843 = vmatprep.subr.mxu0 0.0
      %844 = vmatpush1.msra.mxu0 0.0
      %845 = vmatprep.subr.mxu0 0.0
      %846 = vmatpush1.msra.mxu0 0.0
      %847 = vmatprep.subr.mxu0 0.0
      %848 = vmatpush1.msra.mxu0 0.0
      %849 = vmatprep.subr.mxu0 0.0
      %850 = vmatpush1.msra.mxu0 0.0
      %851 = vmatprep.subr.mxu0 0.0
      %852 = vmatpush1.msra.mxu0 0.0
      %853 = vmatprep.subr.mxu0 0.0
      %854 = vmatpush1.msra.mxu0 0.0
      %855 = vmatprep.subr.mxu0 0.0
      %856 = vmatpush1.msra.mxu0 0.0
      %857 = vmatprep.mubr.f32.mxu0 0.0
      %858 = vmatmul.mubr.f32.gmra.mrb[0].mxu0 %v787
      %v859 = vpop.f32.mrb[0].mxu0
      %v860 = vadd.f32 0.0, %v859
      %v861 = vpop.f32.mrb[0].mxu0
      %v862 = vadd.f32 0.0, %v861
      %863 = vdwg.mxu0
      %864 = vrot.lane.b32.xlu0 %v768, 126
      %v865 = vpop.permute.xlu0 %864
      %866 = vrot.lane.b32.xlu0 %v776, 126
      %v867 = vpop.permute.xlu0 %866
      %868 = vrot.lane.b32.xlu0 %v769, 126
      %v869 = vpop.permute.xlu0 %868
      %vm870 = vcmask 1031168
      %v871 = vsel %vm870, %v865, %v867
      %v872 = vsel %vm870, %v867, %v869
      %v874 = vsel %vm217, %v771, 0
      %v876 = vsel %vm221, %v871, 0
      %v878 = vsel %vm221, %v872, 0
      %880 = vmatprep.subr.mxu0 %v878
      %881 = vmatpush1.msra.mxu0 %v876
      %882 = vmatprep.subr.mxu0 0.0
      %883 = vmatpush1.msra.mxu0 0.0
      %884 = vmatprep.subr.mxu0 0.0
      %885 = vmatpush1.msra.mxu0 0.0
      %886 = vmatprep.subr.mxu0 0.0
      %887 = vmatpush1.msra.mxu0 0.0
      %888 = vmatprep.subr.mxu0 0.0
      %889 = vmatpush1.msra.mxu0 0.0
      %890 = vmatprep.subr.mxu0 0.0
      %891 = vmatpush1.msra.mxu0 0.0
      %892 = vmatprep.subr.mxu0 0.0
      %893 = vmatpush1.msra.mxu0 0.0
      %894 = vmatprep.subr.mxu0 0.0
      %895 = vmatpush1.msra.mxu0 0.0
      %896 = vmatprep.subr.mxu0 0.0
      %897 = vmatpush1.msra.mxu0 0.0
      %898 = vmatprep.subr.mxu0 0.0
      %899 = vmatpush1.msra.mxu0 0.0
      %900 = vmatprep.subr.mxu0 0.0
      %901 = vmatpush1.msra.mxu0 0.0
      %902 = vmatprep.subr.mxu0 0.0
      %903 = vmatpush1.msra.mxu0 0.0
      %904 = vmatprep.subr.mxu0 0.0
      %905 = vmatpush1.msra.mxu0 0.0
      %906 = vmatprep.subr.mxu0 0.0
      %907 = vmatpush1.msra.mxu0 0.0
      %908 = vmatprep.subr.mxu0 0.0
      %909 = vmatpush1.msra.mxu0 0.0
      %910 = vmatprep.subr.mxu0 0.0
      %911 = vmatpush1.msra.mxu0 0.0
      %912 = vmatprep.subr.mxu0 0.0
      %913 = vmatpush1.msra.mxu0 0.0
      %914 = vmatprep.subr.mxu0 0.0
      %915 = vmatpush1.msra.mxu0 0.0
      %916 = vmatprep.subr.mxu0 0.0
      %917 = vmatpush1.msra.mxu0 0.0
      %918 = vmatprep.subr.mxu0 0.0
      %919 = vmatpush1.msra.mxu0 0.0
      %920 = vmatprep.subr.mxu0 0.0
      %921 = vmatpush1.msra.mxu0 0.0
      %922 = vmatprep.subr.mxu0 0.0
      %923 = vmatpush1.msra.mxu0 0.0
      %924 = vmatprep.subr.mxu0 0.0
      %925 = vmatpush1.msra.mxu0 0.0
      %926 = vmatprep.subr.mxu0 0.0
      %927 = vmatpush1.msra.mxu0 0.0
      %928 = vmatprep.subr.mxu0 0.0
      %929 = vmatpush1.msra.mxu0 0.0
      %930 = vmatprep.subr.mxu0 0.0
      %931 = vmatpush1.msra.mxu0 0.0
      %932 = vmatprep.subr.mxu0 0.0
      %933 = vmatpush1.msra.mxu0 0.0
      %934 = vmatprep.subr.mxu0 0.0
      %935 = vmatpush1.msra.mxu0 0.0
      %936 = vmatprep.subr.mxu0 0.0
      %937 = vmatpush1.msra.mxu0 0.0
      %938 = vmatprep.subr.mxu0 0.0
      %939 = vmatpush1.msra.mxu0 0.0
      %940 = vmatprep.subr.mxu0 0.0
      %941 = vmatpush1.msra.mxu0 0.0
      %942 = vmatprep.subr.mxu0 0.0
      %943 = vmatpush1.msra.mxu0 0.0
      %944 = vmatprep.mubr.f32.mxu0 0.0
      %945 = vmatmul.mubr.f32.gmra.mrb[0].mxu0 %v874
      %v946 = vpop.f32.mrb[0].mxu0
      %v947 = vadd.f32 %v860, %v946
      %v948 = vpop.f32.mrb[0].mxu0
      %v949 = vadd.f32 %v862, %v948
      %950 = vdwg.mxu0
      %v951 = vld [vmem:[%s192] sm:$0xff]
      %v952 = vld [vmem:[%s192 + $0x8] sm:$0xf]
      %s953 = scalar_lea.vmem %s1, 64
      %v954 = vld [vmem:[%s953] sm:$0xff]
      %v957 = vcombine.high %v951, %v951
      %958 = vrot.lane.b32.xlu0 %v951, 94
      %v959 = vpop.permute.xlu0 %958
      %960 = vrot.lane.b32.xlu0 %v957, 94
      %v961 = vpop.permute.xlu0 %960
      %962 = vrot.lane.b32.xlu0 %v952, 94
      %v963 = vpop.permute.xlu0 %962
      %vm964 = vcmask 769024
      %v965 = vsel %vm964, %v959, %v961
      %v966 = vsel %vm964, %v961, %v963
      %v968 = vsel %vm217, %v954, 0
      %v970 = vsel %vm221, %v965, 0
      %v972 = vsel %vm221, %v966, 0
      %974 = vmatprep.subr.mxu0 %v972
      %975 = vmatpush1.msra.mxu0 %v970
      %976 = vmatprep.subr.mxu0 0.0
      %977 = vmatpush1.msra.mxu0 0.0
      %978 = vmatprep.subr.mxu0 0.0
      %979 = vmatpush1.msra.mxu0 0.0
      %980 = vmatprep.subr.mxu0 0.0
      %981 = vmatpush1.msra.mxu0 0.0
      %982 = vmatprep.subr.mxu0 0.0
      %983 = vmatpush1.msra.mxu0 0.0
      %984 = vmatprep.subr.mxu0 0.0
      %985 = vmatpush1.msra.mxu0 0.0
      %986 = vmatprep.subr.mxu0 0.0
      %987 = vmatpush1.msra.mxu0 0.0
      %988 = vmatprep.subr.mxu0 0.0
      %989 = vmatpush1.msra.mxu0 0.0
      %990 = vmatprep.subr.mxu0 0.0
      %991 = vmatpush1.msra.mxu0 0.0
      %992 = vmatprep.subr.mxu0 0.0
      %993 = vmatpush1.msra.mxu0 0.0
      %994 = vmatprep.subr.mxu0 0.0
      %995 = vmatpush1.msra.mxu0 0.0
      %996 = vmatprep.subr.mxu0 0.0
      %997 = vmatpush1.msra.mxu0 0.0
      %998 = vmatprep.subr.mxu0 0.0
      %999 = vmatpush1.msra.mxu0 0.0
      %1000 = vmatprep.subr.mxu0 0.0
      %1001 = vmatpush1.msra.mxu0 0.0
      %1002 = vmatprep.subr.mxu0 0.0
      %1003 = vmatpush1.msra.mxu0 0.0
      %1004 = vmatprep.subr.mxu0 0.0
      %1005 = vmatpush1.msra.mxu0 0.0
      %1006 = vmatprep.subr.mxu0 0.0
      %1007 = vmatpush1.msra.mxu0 0.0
      %1008 = vmatprep.subr.mxu0 0.0
      %1009 = vmatpush1.msra.mxu0 0.0
      %1010 = vmatprep.subr.mxu0 0.0
      %1011 = vmatpush1.msra.mxu0 0.0
      %1012 = vmatprep.subr.mxu0 0.0
      %1013 = vmatpush1.msra.mxu0 0.0
      %1014 = vmatprep.subr.mxu0 0.0
      %1015 = vmatpush1.msra.mxu0 0.0
      %1016 = vmatprep.subr.mxu0 0.0
      %1017 = vmatpush1.msra.mxu0 0.0
      %1018 = vmatprep.subr.mxu0 0.0
      %1019 = vmatpush1.msra.mxu0 0.0
      %1020 = vmatprep.subr.mxu0 0.0
      %1021 = vmatpush1.msra.mxu0 0.0
      %1022 = vmatprep.subr.mxu0 0.0
      %1023 = vmatpush1.msra.mxu0 0.0
      %1024 = vmatprep.subr.mxu0 0.0
      %1025 = vmatpush1.msra.mxu0 0.0
      %1026 = vmatprep.subr.mxu0 0.0
      %1027 = vmatpush1.msra.mxu0 0.0
      %1028 = vmatprep.subr.mxu0 0.0
      %1029 = vmatpush1.msra.mxu0 0.0
      %1030 = vmatprep.subr.mxu0 0.0
      %1031 = vmatpush1.msra.mxu0 0.0
      %1032 = vmatprep.subr.mxu0 0.0
      %1033 = vmatpush1.msra.mxu0 0.0
      %1034 = vmatprep.subr.mxu0 0.0
      %1035 = vmatpush1.msra.mxu0 0.0
      %1036 = vmatprep.subr.mxu0 0.0
      %1037 = vmatpush1.msra.mxu0 0.0
      %1038 = vmatprep.mubr.f32.mxu0 0.0
      %1039 = vmatmul.mubr.f32.gmra.mrb[0].mxu0 %v968
      %v1040 = vpop.f32.mrb[0].mxu0
      %v1041 = vadd.f32 0.0, %v1040
      %v1042 = vpop.f32.mrb[0].mxu0
      %v1043 = vadd.f32 0.0, %v1042
      %1044 = vdwg.mxu0
      %v1045 = vadd.f32 %v947, %v1041
      %v1046 = vadd.f32 %v949, %v1043
      %s1047 = scalar_lea.vmem %s2, 1
      %v1048 = vld [vmem:[%s1047] ss:$2 sm:$0x3]
      %v1050 = vlaneseq
      %v1051 = vshrl.u32 %v1050, 7
      %v1052 = vsub.s32 0, %v1051
      %v1053 = vrot.slane %v1048, %v1052
      %v1054 = vlaneseq
      %v1055 = vshrl.u32 %v1054, 7
      %v1056 = vsub.s32 1, %v1055
      %v1057 = vrot.slane %v1048, %v1056
      %v1060 = vmul.f32 %v1045, %v1053
      %v1061 = vmul.f32 %v1046, %v1057
      %v1062 = vadd.f32 %v766, %v1060
      %v1063 = vadd.f32 %v767, %v1061
      %1064 = vst [vmem:[%s197] sm:$0xff] %v1062
      %1065 = vst [vmem:[%s197 + $0x8] sm:$0xff] %v1063
      %p1066 = scmp.lt.s32.totalorder %s15, 1
      %s1067 = scalar_select %p1066, %s15, 1
      %s1068 = smul.addr %s1067, 2
      %s1069 = smul.addr %s1068, 8
      %s1070 = scalar_lea.vmem %s4, %s1069
      // Predicated region
      $region37: #{coord_conv.1} parent=35 // pred_check
        %p1071 = pneg %p122
      $region38: #{coord_conv.1} parent=35 // pred_check_branch
        %1073 = sbr.rel (%p1071) target = $region40
      $region39: #{coord_conv.1} parent=35 // pred_region
        _
      $region40: #{coord_conv.1} parent=35 // pred_fallthru
        _
    $region36: #{coord_conv.1} parent=5 // pred_fallthru
      _
    %p1074 = scmp.le.s32.totalorder 2, %s10
    // Predicated region
    $region41: #{coord_conv.1} parent=5 // pred_check
      %p1075 = pneg %p1074
    $region42: #{coord_conv.1} parent=5 // pred_check_branch
      %1077 = sbr.rel (%p1075) target = $region44
    $region43: #{coord_conv.1} parent=5 // pred_region
      %s1078 = ssub.s32 %s10, 2
      // Predicated region
      $region45: #{coord_conv.1} parent=43 // pred_check
        %p1079 = pneg %p128
      $region46: #{coord_conv.1} parent=43 // pred_check_branch
        %1081 = sbr.rel (%p1079) target = $region48
      $region47: #{coord_conv.1} parent=43 // pred_region
        %p1082 = scmp.lt.s32.totalorder %s16, 1
        %s1083 = scalar_select %p1082, %s16, 1
        %s1084 = smul.addr %s1083, 2
        %s1085 = smul.addr %s1084, 8
        %s1086 = scalar_lea.vmem %s4, %s1085
      $region48: #{coord_conv.1} parent=43 // pred_fallthru
        _
    $region44: #{coord_conv.1} parent=5 // pred_fallthru
      _
  $region6: #{coord_conv.1} parent=0 // loop_footer
    %s14 = sadd.s32 1, %s10
  $region7: #{coord_conv.1} parent=0 // loop_footer_branch
    %9 = sbr.rel target = $region3
  $region8: #{coord_conv.1} parent=0 // loop_exit
    _

</llo_original>
